<compile_context>
chip_gen: v6e
topology: v6e:2x2x1
jax: 0.10.0
libtpu: 0.0.40
codegen_flags: <defaults>
</compile_context>

<pallas_src>
import functools

import jax
import jax.numpy as jnp
from jax.experimental import pallas as pl
from jax.experimental.pallas import tpu as pltpu


def _round_up(x, m):
    return -(-x // m) * m


# ---------------------------------------------------------------------------
# Kernel: fused (weighted) one-hot gather with shared-RHS per-query matmuls.
# ---------------------------------------------------------------------------
def _optcodes_kernel(*refs, pack, nc, lookup_only):
    """For packed query j (j = 0..pack-1) of every row:
         lookup : oh_j = onehot(idx0_j)                      (one where-term)
         lerp   : oh_j = (1-w_j)*onehot(idx0_j) + w_j*onehot(idx1_j)
       then out[:, j*ch:(j+1)*ch] = oh_j @ codes   (same RHS for all j).

    Refs (lookup):  idx (tile_p, pack) i32 | codes (nc, ch) f32 | out (tile_p, pack*ch)
    Refs (lerp)  :  idx (tile_p, 2*pack) i32 | wgt (tile_p, 2*pack) f32
                    | codes (nc, ch) f32 | out (tile_p, pack*ch)
    """
    if lookup_only:
        idx_ref, codes_ref, out_ref = refs
        wgt_ref = None
    else:
        idx_ref, wgt_ref, codes_ref, out_ref = refs

    codes = codes_ref[...]                         # shared MXU RHS, stays resident
    tile_p = out_ref.shape[0]
    # Block-local iota: compares only span n_codes lanes, not pack*n_codes.
    iota = jax.lax.broadcasted_iota(jnp.int32, (tile_p, nc), 1)

    pieces = []
    for j in range(pack):                          # static unroll over packed queries
        g0 = idx_ref[:, j:j + 1]                   # (tile_p, 1) int32
        if lookup_only:
            oh = jnp.where(iota == g0, 1.0, 0.0)   # single compare/select
        else:
            g1 = idx_ref[:, pack + j:pack + j + 1]
            w0 = wgt_ref[:, j:j + 1]               # 1 - w
            w1 = wgt_ref[:, pack + j:pack + j + 1]  # w
            oh = (jnp.where(iota == g0, w0, 0.0)
                  + jnp.where(iota == g1, w1, 0.0))
        pieces.append(jnp.dot(oh, codes, preferred_element_type=jnp.float32))

    res = pieces[0] if pack == 1 else jnp.concatenate(pieces, axis=-1)
    out_ref[...] = res.astype(out_ref.dtype)       # one lane-dense full-width store


# ---------------------------------------------------------------------------
# Wrapper: packing, tiling, padding (plain-XLA glue around the kernel).
# ---------------------------------------------------------------------------
def _optcodes_lerp_lookup(codes, idx0, idx1=None, w=None, *,
                          tile_rows=8192, out_dtype=jnp.float32):
    """lookup:  codes[idx0]
       lerp  :  (1 - w) * codes[idx0] + w * codes[idx1]
    for flat index vectors.  Negative indices wrap (torch-style), everything is
    clamped to [0, n_codes-1]."""
    lookup_only = idx1 is None
    n = idx0.shape[0]
    n_codes, code_ch = codes.shape
    codes = codes.astype(jnp.float32)

    # Lane packing: fold `pack` consecutive queries into the 128-lane output so
    # every HBM store is a full-width unmasked vst.  If code_ch does not divide
    # 128, pad the channel dim up to the next multiple of 128 instead.
    if 0 < code_ch <= 128 and 128 % code_ch == 0:
        pack, ch_pad = 128 // code_ch, code_ch
    else:
        pack, ch_pad = 1, _round_up(code_ch, 128)
    if ch_pad != code_ch:
        codes = jnp.pad(codes, ((0, 0), (0, ch_pad - code_ch)))
    nc_pad = _round_up(n_codes, 8)                 # MXU/K alignment; zero rows inert
    if nc_pad != n_codes:
        codes = jnp.pad(codes, ((0, nc_pad - n_codes), (0, 0)))
    out_w = pack * ch_pad
    row_align = 8 * pack

    # VMEM footprint estimate (Mosaic pads last-2 dims to (8,128); BlockSpec
    # double-buffers every operand).
    tbl_bytes = nc_pad * ch_pad * 4
    n_in = 1 if lookup_only else 2                 # idx (+ weights)

    def vmem_need(rows):
        tp = rows // pack
        idx_b = _round_up(tp, 8) * 128 * 4
        out_b = _round_up(tp, 8) * _round_up(out_w, 128) * 4
        return 2 * (n_in * idx_b + out_b + tbl_bytes)

    # Row tile: as large as possible (amortize per-step overhead), shrunk if it
    # would blow the VMEM budget, and capped so large inputs still get >= 2
    # grid steps for v7x's two TensorCores.
    n_ceil = _round_up(max(n, 1), row_align)
    t = min(_round_up(tile_rows, row_align), n_ceil)
    while t > row_align and vmem_need(t) > (40 << 20):
        t = max(row_align, _round_up(t // 2, row_align))
    steps = -(-n_ceil // t)
    if n_ceil >= 2 * row_align:
        steps = max(steps, 2)                      # keep both v7x TCs busy
    t = min(t, _round_up(-(-n_ceil // steps), row_align))   # balance the steps
    steps = -(-n_ceil // t)
    n_total = steps * t
    tile_p = t // pack

    # ---- index / weight prep ----
    def _pad_to(v):
        p = n_total - n
        return jnp.pad(v, (0, p)) if p else v

    def _prep_idx(v):
        i = v.astype(jnp.float32).astype(jnp.int32)     # trunc toward 0, like .long()
        i = jnp.where(i < 0, i + n_codes, i)            # torch-style negative wrap
        return _pad_to(jnp.clip(i, 0, n_codes - 1))

    i0 = _prep_idx(idx0)
    table_spec = pl.BlockSpec((nc_pad, ch_pad), lambda i: (0, 0))
    if lookup_only:
        idx_cols = i0.reshape(-1, pack)
        operands = (idx_cols,)
        in_specs = [pl.BlockSpec((tile_p, pack), lambda i: (i, 0)), table_spec]
    else:
        i1 = _prep_idx(idx1)
        wv = _pad_to(w.astype(jnp.float32))
        idx_cols = jnp.concatenate([i0.reshape(-1, pack), i1.reshape(-1, pack)], -1)
        wgt_cols = jnp.concatenate([(1.0 - wv).reshape(-1, pack),
                                    wv.reshape(-1, pack)], -1)
        operands = (idx_cols, wgt_cols)
        in_specs = [pl.BlockSpec((tile_p, 2 * pack), lambda i: (i, 0)),
                    pl.BlockSpec((tile_p, 2 * pack), lambda i: (i, 0)),
                    table_spec]

    vmem_limit = int(min(vmem_need(t) + (4 << 20), 48 << 20))

    out = pl.pallas_call(
        functools.partial(_optcodes_kernel, pack=pack, nc=nc_pad,
                          lookup_only=lookup_only),
        out_shape=jax.ShapeDtypeStruct((n_total // pack, out_w), out_dtype),
        grid_spec=pltpu.PrefetchScalarGridSpec(
            num_scalar_prefetch=0,
            grid=(steps,),
            in_specs=in_specs,
            out_specs=pl.BlockSpec((tile_p, out_w), lambda i: (i, 0)),
        ),
        compiler_params=pltpu.CompilerParams(
            dimension_semantics=("parallel",),
            vmem_limit_bytes=vmem_limit),
    )(*operands, codes)

    # Row-major reshape back to one query per row is free; drop pad rows/lanes.
    return out.reshape(n_total, ch_pad)[:n, :code_ch]


# ---------------------------------------------------------------------------
# Module wrapper reproducing Optcodes.forward semantics.
# ---------------------------------------------------------------------------
class OptcodesPallas:
    def __init__(self, n_codes, code_ch, idx_map=None, transform_code=False,
                 mean=None, std=None, key=None):
        self.n_codes = n_codes
        self.code_ch = code_ch
        self.transform_code = transform_code
        self.idx_map = None if idx_map is None else jnp.asarray(idx_map, jnp.int32)
        if key is None:
            key = jax.random.PRNGKey(0)
        # init_parameters()
        if mean is None:
            xavier_std = (2.0 / (n_codes + code_ch)) ** 0.5   # xavier_normal_
            self.codes = xavier_std * jax.random.normal(
                key, (n_codes, code_ch), jnp.float32)
        elif std is not None and std > 0.0:
            self.codes = mean + std * jax.random.normal(
                key, (n_codes, code_ch), jnp.float32)
        else:
            self.codes = jnp.full((n_codes, code_ch), mean, jnp.float32)

    def __call__(self, idx, t=None, training=True):
        idx = jnp.asarray(idx)
        shape = idx.shape[:-1]
        if self.idx_map is not None:
            # Matches the PyTorch reference exactly: idx_map is applied to the
            # WHOLE idx tensor (blend-weight column included for lerp inputs).
            idx = self.idx_map[idx.astype(jnp.int32)].astype(jnp.float32)
        idx = idx.astype(jnp.float32)

        if idx.shape[-1] != 1:
            # lerp branch: last dim = [idx0, idx1, w]
            flat = idx.reshape(-1, idx.shape[-1])
            codes = _optcodes_lerp_lookup(self.codes, flat[:, 0], flat[:, 1],
                                          flat[:, 2])
        else:
            # plain lookup branch (no lerp -> half the one-hot VALU work,
            # no weight operand DMA'd).
            flat = idx.reshape(-1)
            codes = _optcodes_lerp_lookup(self.codes, flat)
        codes = codes.reshape(shape + (self.code_ch,))

        if not training:
            # Eval-mode "all indices missing" branch; like PyTorch, the check
            # runs over the whole idx tensor.  jit-safe select instead of a
            # host-synced Python bool.
            use_mean = jnp.max(idx) < 0
            mean_codes = jnp.broadcast_to(
                jnp.mean(self.codes, axis=0, keepdims=True), codes.shape)
            codes = jnp.where(use_mean, mean_codes, codes)

        if self.transform_code:
            # codes.view(t.shape[0], 4, -1).flatten(start_dim=-2)
            codes = codes.reshape(t.shape[0], 4, -1).reshape(t.shape[0], -1)
        return codes


# ---------------------------------------------------------------------------
if __name__ == "__main__":
    key = jax.random.PRNGKey(0)
    (k_codes, k_i0, k_i1, k_w, k_single, k_big,
     k_c2, k_i2) = jax.random.split(key, 8)

    n_codes, code_ch = 16, 32
    N = 16

    mod = OptcodesPallas(n_codes, code_ch, key=k_codes)

    # ---- lerp branch: idx last dim = 3 -> [index0, index1, blend weight] ----
    i0 = jax.random.randint(k_i0, (N,), 0, n_codes).astype(jnp.float32)
    i1 = jax.random.randint(k_i1, (N,), 0, n_codes).astype(jnp.float32)
    w = jax.random.uniform(k_w, (N,), jnp.float32)
    idx_lerp = jnp.stack([i0, i1, w], axis=-1)          # (N, 3)

    out_lerp = jax.block_until_ready(mod(idx_lerp))
    c0 = mod.codes[i0.astype(jnp.int32)]
    c1 = mod.codes[i1.astype(jnp.int32)]
    ref_lerp = c0 + w[:, None] * (c1 - c0)
    assert out_lerp.shape == (N, code_ch)
    assert jnp.allclose(out_lerp, ref_lerp, atol=1e-5, rtol=1e-5)

    # ---- plain lookup branch: idx last dim = 1 ----
    idx_single = jax.random.randint(
        k_single, (N, 1), 0, n_codes).astype(jnp.float32)
    out_single = jax.block_until_ready(mod(idx_single))
    ref_single = mod.codes[idx_single[:, 0].astype(jnp.int32)]
    assert out_single.shape == (N, code_ch)
    assert jnp.allclose(out_single, ref_single, atol=1e-5, rtol=1e-5)

    # ---- eval-mode "all negative" branch (jit-safe select) ----
    out_mean = jax.block_until_ready(
        mod(-jnp.ones((N, 1), jnp.float32), training=False))
    assert jnp.allclose(out_mean, jnp.broadcast_to(
        mod.codes.mean(0, keepdims=True), (N, code_ch)), atol=1e-6)

    # ---- multi-grid-step + padding path (small, tile_rows forced to 32) ----
    Nb = 100
    kb0, kb1, kbw = jax.random.split(k_big, 3)
    bi0 = jax.random.randint(kb0, (Nb,), 0, n_codes).astype(jnp.float32)
    bi1 = jax.random.randint(kb1, (Nb,), 0, n_codes).astype(jnp.float32)
    bw = jax.random.uniform(kbw, (Nb,), jnp.float32)
    out_big = jax.block_until_ready(
        _optcodes_lerp_lookup(mod.codes, bi0, bi1, bw, tile_rows=32))
    ref_big = (mod.codes[bi0.astype(jnp.int32)]
               + bw[:, None] * (mod.codes[bi1.astype(jnp.int32)]
                                - mod.codes[bi0.astype(jnp.int32)]))
    assert out_big.shape == (Nb, code_ch)
    assert jnp.allclose(out_big, ref_big, atol=1e-5, rtol=1e-5)

    # ---- pack==1 fallback: code_ch not a divisor of 128 (channel padding) ----
    nc2, ch2, N2 = 10, 48, 37
    codes2 = jax.random.normal(k_c2, (nc2, ch2), jnp.float32)
    i2 = jax.random.randint(k_i2, (N2,), 0, nc2).astype(jnp.float32)
    out2 = jax.block_until_ready(_optcodes_lerp_lookup(codes2, i2))
    ref2 = codes2[i2.astype(jnp.int32)]
    assert out2.shape == (N2, ch2)
    assert jnp.allclose(out2, ref2, atol=1e-5, rtol=1e-5)

    print("KERNEL_OK")
</pallas_src>

<mosaic_0001>
module attributes {stable_mosaic.version = 11 : i64} {
  func.func @_optcodes_kernel(%arg0: i32, %arg1: memref<8x8xi32, #tpu.memory_space<vmem>>, %arg2: memref<8x8xf32, #tpu.memory_space<vmem>>, %arg3: memref<16x32xf32, #tpu.memory_space<vmem>>, %arg4: memref<8x128xf32, #tpu.memory_space<vmem>>) attributes {dimension_semantics = [#tpu.dimension_semantics<parallel>], iteration_bounds = array<i64: 1>, scalar_prefetch = 0 : i64, scratch_operands = 0 : i64, tpu.core_type = #tpu.core_type<tc>, window_params = [{transform_indices = @transform_0, window_bounds = array<i64: 8, 8>}, {transform_indices = @transform_1, window_bounds = array<i64: 8, 8>}, {pipeline_mode = #tpu.pipeline_mode<synchronous>, transform_indices = @transform_2, window_bounds = array<i64: 16, 32>}, {transform_indices = @transform_3, window_bounds = array<i64: 8, 128>}]} {
    %c0 = arith.constant 0 : index
    %c0_0 = arith.constant 0 : index
    %0 = vector.load %arg3[%c0, %c0_0] : memref<16x32xf32, #tpu.memory_space<vmem>>, vector<16x32xf32>
    %1 = tpu.iota {dimensions = array<i32: 1>} : vector<8x16xi32>
    %c0_1 = arith.constant 0 : index
    %c0_2 = arith.constant 0 : index
    %2 = vector.load %arg1[%c0_1, %c0_2] : memref<8x8xi32, #tpu.memory_space<vmem>>, vector<8x1xi32>
    %c0_3 = arith.constant 0 : index
    %c4 = arith.constant 4 : index
    %3 = vector.load %arg1[%c0_3, %c4] : memref<8x8xi32, #tpu.memory_space<vmem>>, vector<8x1xi32>
    %c0_4 = arith.constant 0 : index
    %c0_5 = arith.constant 0 : index
    %4 = vector.load %arg2[%c0_4, %c0_5] : memref<8x8xf32, #tpu.memory_space<vmem>>, vector<8x1xf32>
    %c0_6 = arith.constant 0 : index
    %c4_7 = arith.constant 4 : index
    %5 = vector.load %arg2[%c0_6, %c4_7] : memref<8x8xf32, #tpu.memory_space<vmem>>, vector<8x1xf32>
    %6 = vector.broadcast %2 : vector<8x1xi32> to vector<8x16xi32>
    %7 = arith.cmpi eq, %1, %6 : vector<8x16xi32>
    %cst = arith.constant 0.000000e+00 : f32
    %8 = vector.shape_cast %4 : vector<8x1xf32> to vector<8x1xf32>
    %9 = vector.broadcast %8 : vector<8x1xf32> to vector<8x16xf32>
    %10 = vector.broadcast %cst : f32 to vector<8x16xf32>
    %11 = arith.select %7, %9, %10 : vector<8x16xi1>, vector<8x16xf32>
    %12 = vector.broadcast %3 : vector<8x1xi32> to vector<8x16xi32>
    %13 = arith.cmpi eq, %1, %12 : vector<8x16xi32>
    %cst_8 = arith.constant 0.000000e+00 : f32
    %14 = vector.shape_cast %5 : vector<8x1xf32> to vector<8x1xf32>
    %15 = vector.broadcast %14 : vector<8x1xf32> to vector<8x16xf32>
    %16 = vector.broadcast %cst_8 : f32 to vector<8x16xf32>
    %17 = arith.select %13, %15, %16 : vector<8x16xi1>, vector<8x16xf32>
    %18 = arith.addf %11, %17 : vector<8x16xf32>
    %cst_9 = arith.constant dense<0.000000e+00> : vector<8x32xf32>
    %19 = tpu.matmul %18, %0, %cst_9 {dimension_numbers = #tpu.dot_dimension_numbers<[1], [0], [0], [1], [0, 0, 1, 1], [], []>} : vector<8x16xf32>, vector<16x32xf32>, vector<8x32xf32> -> vector<8x32xf32>
    %c0_10 = arith.constant 0 : index
    %c1 = arith.constant 1 : index
    %20 = vector.load %arg1[%c0_10, %c1] : memref<8x8xi32, #tpu.memory_space<vmem>>, vector<8x1xi32>
    %c0_11 = arith.constant 0 : index
    %c5 = arith.constant 5 : index
    %21 = vector.load %arg1[%c0_11, %c5] : memref<8x8xi32, #tpu.memory_space<vmem>>, vector<8x1xi32>
    %c0_12 = arith.constant 0 : index
    %c1_13 = arith.constant 1 : index
    %22 = vector.load %arg2[%c0_12, %c1_13] : memref<8x8xf32, #tpu.memory_space<vmem>>, vector<8x1xf32>
    %c0_14 = arith.constant 0 : index
    %c5_15 = arith.constant 5 : index
    %23 = vector.load %arg2[%c0_14, %c5_15] : memref<8x8xf32, #tpu.memory_space<vmem>>, vector<8x1xf32>
    %24 = vector.broadcast %20 : vector<8x1xi32> to vector<8x16xi32>
    %25 = arith.cmpi eq, %1, %24 : vector<8x16xi32>
    %cst_16 = arith.constant 0.000000e+00 : f32
    %26 = vector.shape_cast %22 : vector<8x1xf32> to vector<8x1xf32>
    %27 = vector.broadcast %26 : vector<8x1xf32> to vector<8x16xf32>
    %28 = vector.broadcast %cst_16 : f32 to vector<8x16xf32>
    %29 = arith.select %25, %27, %28 : vector<8x16xi1>, vector<8x16xf32>
    %30 = vector.broadcast %21 : vector<8x1xi32> to vector<8x16xi32>
    %31 = arith.cmpi eq, %1, %30 : vector<8x16xi32>
    %cst_17 = arith.constant 0.000000e+00 : f32
    %32 = vector.shape_cast %23 : vector<8x1xf32> to vector<8x1xf32>
    %33 = vector.broadcast %32 : vector<8x1xf32> to vector<8x16xf32>
    %34 = vector.broadcast %cst_17 : f32 to vector<8x16xf32>
    %35 = arith.select %31, %33, %34 : vector<8x16xi1>, vector<8x16xf32>
    %36 = arith.addf %29, %35 : vector<8x16xf32>
    %cst_18 = arith.constant dense<0.000000e+00> : vector<8x32xf32>
    %37 = tpu.matmul %36, %0, %cst_18 {dimension_numbers = #tpu.dot_dimension_numbers<[1], [0], [0], [1], [0, 0, 1, 1], [], []>} : vector<8x16xf32>, vector<16x32xf32>, vector<8x32xf32> -> vector<8x32xf32>
    %c0_19 = arith.constant 0 : index
    %c2 = arith.constant 2 : index
    %38 = vector.load %arg1[%c0_19, %c2] : memref<8x8xi32, #tpu.memory_space<vmem>>, vector<8x1xi32>
    %c0_20 = arith.constant 0 : index
    %c6 = arith.constant 6 : index
    %39 = vector.load %arg1[%c0_20, %c6] : memref<8x8xi32, #tpu.memory_space<vmem>>, vector<8x1xi32>
    %c0_21 = arith.constant 0 : index
    %c2_22 = arith.constant 2 : index
    %40 = vector.load %arg2[%c0_21, %c2_22] : memref<8x8xf32, #tpu.memory_space<vmem>>, vector<8x1xf32>
    %c0_23 = arith.constant 0 : index
    %c6_24 = arith.constant 6 : index
    %41 = vector.load %arg2[%c0_23, %c6_24] : memref<8x8xf32, #tpu.memory_space<vmem>>, vector<8x1xf32>
    %42 = vector.broadcast %38 : vector<8x1xi32> to vector<8x16xi32>
    %43 = arith.cmpi eq, %1, %42 : vector<8x16xi32>
    %cst_25 = arith.constant 0.000000e+00 : f32
    %44 = vector.shape_cast %40 : vector<8x1xf32> to vector<8x1xf32>
    %45 = vector.broadcast %44 : vector<8x1xf32> to vector<8x16xf32>
    %46 = vector.broadcast %cst_25 : f32 to vector<8x16xf32>
    %47 = arith.select %43, %45, %46 : vector<8x16xi1>, vector<8x16xf32>
    %48 = vector.broadcast %39 : vector<8x1xi32> to vector<8x16xi32>
    %49 = arith.cmpi eq, %1, %48 : vector<8x16xi32>
    %cst_26 = arith.constant 0.000000e+00 : f32
    %50 = vector.shape_cast %41 : vector<8x1xf32> to vector<8x1xf32>
    %51 = vector.broadcast %50 : vector<8x1xf32> to vector<8x16xf32>
    %52 = vector.broadcast %cst_26 : f32 to vector<8x16xf32>
    %53 = arith.select %49, %51, %52 : vector<8x16xi1>, vector<8x16xf32>
    %54 = arith.addf %47, %53 : vector<8x16xf32>
    %cst_27 = arith.constant dense<0.000000e+00> : vector<8x32xf32>
    %55 = tpu.matmul %54, %0, %cst_27 {dimension_numbers = #tpu.dot_dimension_numbers<[1], [0], [0], [1], [0, 0, 1, 1], [], []>} : vector<8x16xf32>, vector<16x32xf32>, vector<8x32xf32> -> vector<8x32xf32>
    %c0_28 = arith.constant 0 : index
    %c3 = arith.constant 3 : index
    %56 = vector.load %arg1[%c0_28, %c3] : memref<8x8xi32, #tpu.memory_space<vmem>>, vector<8x1xi32>
    %c0_29 = arith.constant 0 : index
    %c7 = arith.constant 7 : index
    %57 = vector.load %arg1[%c0_29, %c7] : memref<8x8xi32, #tpu.memory_space<vmem>>, vector<8x1xi32>
    %c0_30 = arith.constant 0 : index
    %c3_31 = arith.constant 3 : index
    %58 = vector.load %arg2[%c0_30, %c3_31] : memref<8x8xf32, #tpu.memory_space<vmem>>, vector<8x1xf32>
    %c0_32 = arith.constant 0 : index
    %c7_33 = arith.constant 7 : index
    %59 = vector.load %arg2[%c0_32, %c7_33] : memref<8x8xf32, #tpu.memory_space<vmem>>, vector<8x1xf32>
    %60 = vector.broadcast %56 : vector<8x1xi32> to vector<8x16xi32>
    %61 = arith.cmpi eq, %1, %60 : vector<8x16xi32>
    %cst_34 = arith.constant 0.000000e+00 : f32
    %62 = vector.shape_cast %58 : vector<8x1xf32> to vector<8x1xf32>
    %63 = vector.broadcast %62 : vector<8x1xf32> to vector<8x16xf32>
    %64 = vector.broadcast %cst_34 : f32 to vector<8x16xf32>
    %65 = arith.select %61, %63, %64 : vector<8x16xi1>, vector<8x16xf32>
    %66 = vector.broadcast %57 : vector<8x1xi32> to vector<8x16xi32>
    %67 = arith.cmpi eq, %1, %66 : vector<8x16xi32>
    %cst_35 = arith.constant 0.000000e+00 : f32
    %68 = vector.shape_cast %59 : vector<8x1xf32> to vector<8x1xf32>
    %69 = vector.broadcast %68 : vector<8x1xf32> to vector<8x16xf32>
    %70 = vector.broadcast %cst_35 : f32 to vector<8x16xf32>
    %71 = arith.select %67, %69, %70 : vector<8x16xi1>, vector<8x16xf32>
    %72 = arith.addf %65, %71 : vector<8x16xf32>
    %cst_36 = arith.constant dense<0.000000e+00> : vector<8x32xf32>
    %73 = tpu.matmul %72, %0, %cst_36 {dimension_numbers = #tpu.dot_dimension_numbers<[1], [0], [0], [1], [0, 0, 1, 1], [], []>} : vector<8x16xf32>, vector<16x32xf32>, vector<8x32xf32> -> vector<8x32xf32>
    %74 = tpu.concatenate %19, %37, %55, %73 in 1 : vector<8x32xf32>, vector<8x32xf32>, vector<8x32xf32>, vector<8x32xf32> -> vector<8x128xf32>
    %c0_37 = arith.constant 0 : index
    %c0_38 = arith.constant 0 : index
    %75 = vector.load %arg4[%c0_37, %c0_38] : memref<8x128xf32, #tpu.memory_space<vmem>>, vector<8x128xf32>
    tpu.vector_store %arg4[%c0_37, %c0_38], %74 {strides = array<i32>} : memref<8x128xf32, #tpu.memory_space<vmem>>, vector<8x128xf32>,
    return
  }
  func.func @transform_0(%arg0: i32) -> (i32, i32) {
    %c0_i32 = arith.constant 0 : i32
    %c0_i32_0 = arith.constant 0 : i32
    return %arg0, %c0_i32 : i32, i32
  }
  func.func @transform_1(%arg0: i32) -> (i32, i32) {
    %c0_i32 = arith.constant 0 : i32
    %c0_i32_0 = arith.constant 0 : i32
    return %arg0, %c0_i32 : i32, i32
  }
  func.func @transform_2(%arg0: i32) -> (i32, i32) {
    %c0_i32 = arith.constant 0 : i32
    %c0_i32_0 = arith.constant 0 : i32
    %c0_i32_1 = arith.constant 0 : i32
    return %c0_i32, %c0_i32_0 : i32, i32
  }
  func.func @transform_3(%arg0: i32) -> (i32, i32) {
    %c0_i32 = arith.constant 0 : i32
    %c0_i32_0 = arith.constant 0 : i32
    return %arg0, %c0_i32 : i32, i32
  }
}

</mosaic_0001>

<llo_original>
// kernel: tpu_custom_call.1
$region0: #{tpu_custom_call.1}
  #allocation0 [shape = 'u32[]', space=smem, size = 0x4, offset = 0x4, fixed_abs, tag = 'smem constant byte address 0x4 - core index']
  #allocation1 [shape = 'u32[144,128]{1,0:T(1,128)}', space=vmem, size = 0x12000, scoped, tag = 'internal scratch']
  %s0 = inlined_call_operand.hbm [shape: s32[8,8], index: 0, kind: input, shape index: {}]
  %s1 = inlined_call_operand.hbm [shape: f32[8,8], index: 1, kind: input, shape index: {}]
  %s2 = inlined_call_operand.hbm [shape: f32[16,32], index: 2, kind: input, shape index: {}]
  %s3 = inlined_call_operand.hbm [shape: f32[8,128], index: 3, kind: output, shape index: {}]
  %s4 = sld [smem:[#allocation0]]
  $region34: #{tpu_custom_call.1} parent=0
    _
  %s6 = ssub.s32 1, %s4
  %s7 = scalar_select 0, %s6, %s4
  $region1: #{tpu_custom_call.1} parent=0
    #allocation2 [shape = 'u8[4096]{0}', space=vmem, size = 0x1000, scoped, tag = 'input window, operand 0, single buffered']
    #allocation3 [shape = 's32[1]{0}', space=sflag, size = 0x4, scoped, tag = 'scoped memory for tpu_custom_call.1']
    #allocation4 [shape = 's32[1]{0}', space=sflag, size = 0x4, scoped, tag = 'scoped memory for tpu_custom_call.1']
    #allocation5 [shape = 'u8[4096]{0}', space=vmem, size = 0x1000, scoped, tag = 'input window, operand 1, single buffered']
    #allocation6 [shape = 's32[1]{0}', space=sflag, size = 0x4, scoped, tag = 'scoped memory for tpu_custom_call.1']
    #allocation7 [shape = 'u8[8192]{0}', space=vmem, size = 0x2000, scoped, tag = 'input window, operand 2, single buffered']
    #allocation8 [shape = 'u8[4096]{0}', space=vmem, size = 0x1000, scoped, tag = 'output window, operand 0, single buffered']
    %8 = vsyncpa [#allocation3], 0
    %9 = vsyncpa [#allocation6], 0
    %10 = vsyncpa [#allocation4], 0
    // Predicated region
    $region2: #{tpu_custom_call.1} parent=1 // pred_check
      _
    $region3: #{tpu_custom_call.1} parent=1 // pred_check_branch
      %12 = sbr.rel (0) target = $region5
    $region4: #{tpu_custom_call.1} parent=1 // pred_region
      %s14 = ssub.s32 128, 128
      %15 = vsyncadd [#allocation3], %s14
      %s17 = sshll.u32 [#allocation2], 4
      %s18 = int_to_ptr.vmem [resolvable:$true] %s17
      %20 = dma.hbm_to_vmem [thread:$0]  %s0, 128, %s18, [#allocation3]
    $region5: #{tpu_custom_call.1} parent=1 // pred_fallthru
      _
    // Predicated region
    $region6: #{tpu_custom_call.1} parent=1 // pred_check
      _
    $region7: #{tpu_custom_call.1} parent=1 // pred_check_branch
      %22 = sbr.rel (0) target = $region9
    $region8: #{tpu_custom_call.1} parent=1 // pred_region
      %s24 = ssub.s32 128, 128
      %25 = vsyncadd [#allocation6], %s24
      %s27 = sshll.u32 [#allocation5], 4
      %s28 = int_to_ptr.vmem [resolvable:$true] %s27
      %30 = dma.hbm_to_vmem [thread:$0]  %s1, 128, %s28, [#allocation6]
    $region9: #{tpu_custom_call.1} parent=1 // pred_fallthru
      _
    // Predicated region
    $region10: #{tpu_custom_call.1} parent=1 // pred_check
      _
    $region11: #{tpu_custom_call.1} parent=1 // pred_check_branch
      %32 = sbr.rel (0) target = $region13
    $region12: #{tpu_custom_call.1} parent=1 // pred_region
      %s34 = ssub.s32 256, 256
      %35 = vsyncadd [#allocation6], %s34
      %s36 = sshll.u32 [#allocation7], 4
      %s37 = int_to_ptr.vmem [resolvable:$true] %s36
      %42 = dma.hbm_to_vmem [thread:$0]  %s2, 256, %s37, [#allocation6], 128, 128, 8
    $region13: #{tpu_custom_call.1} parent=1 // pred_fallthru
      _
    // Predicated region
    $region14: #{tpu_custom_call.1} parent=1 // pred_check
      _
    $region15: #{tpu_custom_call.1} parent=1 // pred_check_branch
      %44 = sbr.rel (0) target = $region17
    $region16: #{tpu_custom_call.1} parent=1 // pred_region
      %45 = dma.done [#allocation3], 128
    $region17: #{tpu_custom_call.1} parent=1 // pred_fallthru
      _
    // Predicated region
    $region18: #{tpu_custom_call.1} parent=1 // pred_check
      _
    $region19: #{tpu_custom_call.1} parent=1 // pred_check_branch
      %47 = sbr.rel (0) target = $region21
    $region20: #{tpu_custom_call.1} parent=1 // pred_region
      %48 = dma.done [#allocation6], 128
    $region21: #{tpu_custom_call.1} parent=1 // pred_fallthru
      _
    // Predicated region
    $region22: #{tpu_custom_call.1} parent=1 // pred_check
      _
    $region23: #{tpu_custom_call.1} parent=1 // pred_check_branch
      %50 = sbr.rel (0) target = $region25
    $region24: #{tpu_custom_call.1} parent=1 // pred_region
      %51 = dma.done [#allocation6], 256
    $region25: #{tpu_custom_call.1} parent=1 // pred_fallthru
      _
    %v52 = vld [vmem:[#allocation7] sm:$0xff]
    %v53 = vld [vmem:[#allocation7 + $0x8] sm:$0xff]
    %v54 = vlaneseq
    %v55 = vand.u32 %v54, 127
    %v56 = vld [vmem:[#allocation2] sm:$0xff]
    %v57 = vld [vmem:[#allocation5] sm:$0xff]
    %58 = vset.pattern.permute.xlu0 0
    %59 = vperm.xlu0 %58, %v56
    %v60 = vpop.permute.xlu0 %59
    %vm61 = vcmp.eq.s32.totalorder %v55, %v60
    %63 = vset.pattern.permute.xlu0 0
    %64 = vperm.xlu0 %63, %v57
    %v65 = vpop.permute.xlu0 %64
    %v67 = vsel %vm61, %v65, 0.0
    %68 = vset.pattern.permute.xlu0 4
    %69 = vperm.xlu0 %68, %v56
    %v70 = vpop.permute.xlu0 %69
    %vm71 = vcmp.eq.s32.totalorder %v55, %v70
    %72 = vset.pattern.permute.xlu0 4
    %73 = vperm.xlu0 %72, %v57
    %v74 = vpop.permute.xlu0 %73
    %v76 = vsel %vm71, %v74, 0.0
    %v77 = vadd.f32 %v67, %v76
    %vm78 = vcmask 130048
    %v80 = vsel %vm78, %v77, 0
    %82 = vmatprep.subr.mxu0 0.0
    %83 = vmatpush1.msra.mxu0 0.0
    %84 = vmatprep.subr.mxu0 0.0
    %85 = vmatpush1.msra.mxu0 0.0
    %86 = vmatprep.subr.mxu0 0.0
    %87 = vmatpush1.msra.mxu0 0.0
    %88 = vmatprep.subr.mxu0 0.0
    %89 = vmatpush1.msra.mxu0 0.0
    %90 = vmatprep.subr.mxu0 0.0
    %91 = vmatpush1.msra.mxu0 0.0
    %92 = vmatprep.subr.mxu0 0.0
    %93 = vmatpush1.msra.mxu0 0.0
    %94 = vmatprep.subr.mxu0 0.0
    %95 = vmatpush1.msra.mxu0 0.0
    %96 = vmatprep.subr.mxu0 0.0
    %97 = vmatpush1.msra.mxu0 0.0
    %98 = vmatprep.subr.mxu0 0.0
    %99 = vmatpush1.msra.mxu0 0.0
    %100 = vmatprep.subr.mxu0 0.0
    %101 = vmatpush1.msra.mxu0 0.0
    %102 = vmatprep.subr.mxu0 0.0
    %103 = vmatpush1.msra.mxu0 0.0
    %104 = vmatprep.subr.mxu0 0.0
    %105 = vmatpush1.msra.mxu0 0.0
    %106 = vmatprep.subr.mxu0 0.0
    %107 = vmatpush1.msra.mxu0 0.0
    %108 = vmatprep.subr.mxu0 0.0
    %109 = vmatpush1.msra.mxu0 0.0
    %110 = vmatprep.subr.mxu0 0.0
    %111 = vmatpush1.msra.mxu0 %v53
    %112 = vmatprep.subr.mxu0 0.0
    %113 = vmatpush1.msra.mxu0 %v52
    %114 = vmatprep.subr.mxu0 0.0
    %115 = vmatpush2.msra.mxu0 0.0
    %116 = vmatprep.subr.mxu0 0.0
    %117 = vmatpush2.msra.mxu0 0.0
    %118 = vmatprep.subr.mxu0 0.0
    %119 = vmatpush2.msra.mxu0 0.0
    %120 = vmatprep.subr.mxu0 0.0
    %121 = vmatpush2.msra.mxu0 0.0
    %122 = vmatprep.subr.mxu0 0.0
    %123 = vmatpush2.msra.mxu0 0.0
    %124 = vmatprep.subr.mxu0 0.0
    %125 = vmatpush2.msra.mxu0 0.0
    %126 = vmatprep.subr.mxu0 0.0
    %127 = vmatpush2.msra.mxu0 0.0
    %128 = vmatprep.subr.mxu0 0.0
    %129 = vmatpush2.msra.mxu0 0.0
    %130 = vmatprep.subr.mxu0 0.0
    %131 = vmatpush2.msra.mxu0 0.0
    %132 = vmatprep.subr.mxu0 0.0
    %133 = vmatpush2.msra.mxu0 0.0
    %134 = vmatprep.subr.mxu0 0.0
    %135 = vmatpush2.msra.mxu0 0.0
    %136 = vmatprep.subr.mxu0 0.0
    %137 = vmatpush2.msra.mxu0 0.0
    %138 = vmatprep.subr.mxu0 0.0
    %139 = vmatpush2.msra.mxu0 0.0
    %140 = vmatprep.subr.mxu0 0.0
    %141 = vmatpush2.msra.mxu0 0.0
    %142 = vmatprep.subr.mxu0 0.0
    %143 = vmatpush2.msra.mxu0 0.0
    %144 = vmatprep.subr.mxu0 0.0
    %145 = vmatpush2.msra.mxu0 0.0
    %146 = vmatprep.mubr.f32.mxu0 0.0
    %147 = vmatmul.mubr.f32.gmra.mxu0 %v80
    %v148 = vpop.f32.mrf.mxu0
    %v149 = vadd.f32 0.0, %v148
    %v150 = vpop.f32.mrf.mxu0
    %151 = vdwg.mxu0
    %152 = vset.pattern.permute.xlu0 1
    %153 = vperm.xlu0 %152, %v56
    %v154 = vpop.permute.xlu0 %153
    %vm155 = vcmp.eq.s32.totalorder %v55, %v154
    %156 = vset.pattern.permute.xlu0 1
    %157 = vperm.xlu0 %156, %v57
    %v158 = vpop.permute.xlu0 %157
    %v160 = vsel %vm155, %v158, 0.0
    %161 = vset.pattern.permute.xlu0 5
    %162 = vperm.xlu0 %161, %v56
    %v163 = vpop.permute.xlu0 %162
    %vm164 = vcmp.eq.s32.totalorder %v55, %v163
    %165 = vset.pattern.permute.xlu0 5
    %166 = vperm.xlu0 %165, %v57
    %v167 = vpop.permute.xlu0 %166
    %v169 = vsel %vm164, %v167, 0.0
    %v170 = vadd.f32 %v160, %v169
    %v172 = vsel %vm78, %v170, 0
    %174 = vmatprep.subr.mxu0 0.0
    %175 = vmatpush1.msra.mxu0 0.0
    %176 = vmatprep.subr.mxu0 0.0
    %177 = vmatpush1.msra.mxu0 0.0
    %178 = vmatprep.subr.mxu0 0.0
    %179 = vmatpush1.msra.mxu0 0.0
    %180 = vmatprep.subr.mxu0 0.0
    %181 = vmatpush1.msra.mxu0 0.0
    %182 = vmatprep.subr.mxu0 0.0
    %183 = vmatpush1.msra.mxu0 0.0
    %184 = vmatprep.subr.mxu0 0.0
    %185 = vmatpush1.msra.mxu0 0.0
    %186 = vmatprep.subr.mxu0 0.0
    %187 = vmatpush1.msra.mxu0 0.0
    %188 = vmatprep.subr.mxu0 0.0
    %189 = vmatpush1.msra.mxu0 0.0
    %190 = vmatprep.subr.mxu0 0.0
    %191 = vmatpush1.msra.mxu0 0.0
    %192 = vmatprep.subr.mxu0 0.0
    %193 = vmatpush1.msra.mxu0 0.0
    %194 = vmatprep.subr.mxu0 0.0
    %195 = vmatpush1.msra.mxu0 0.0
    %196 = vmatprep.subr.mxu0 0.0
    %197 = vmatpush1.msra.mxu0 0.0
    %198 = vmatprep.subr.mxu0 0.0
    %199 = vmatpush1.msra.mxu0 0.0
    %200 = vmatprep.subr.mxu0 0.0
    %201 = vmatpush1.msra.mxu0 0.0
    %202 = vmatprep.subr.mxu0 0.0
    %203 = vmatpush1.msra.mxu0 %v53
    %204 = vmatprep.subr.mxu0 0.0
    %205 = vmatpush1.msra.mxu0 %v52
    %206 = vmatprep.subr.mxu0 0.0
    %207 = vmatpush2.msra.mxu0 0.0
    %208 = vmatprep.subr.mxu0 0.0
    %209 = vmatpush2.msra.mxu0 0.0
    %210 = vmatprep.subr.mxu0 0.0
    %211 = vmatpush2.msra.mxu0 0.0
    %212 = vmatprep.subr.mxu0 0.0
    %213 = vmatpush2.msra.mxu0 0.0
    %214 = vmatprep.subr.mxu0 0.0
    %215 = vmatpush2.msra.mxu0 0.0
    %216 = vmatprep.subr.mxu0 0.0
    %217 = vmatpush2.msra.mxu0 0.0
    %218 = vmatprep.subr.mxu0 0.0
    %219 = vmatpush2.msra.mxu0 0.0
    %220 = vmatprep.subr.mxu0 0.0
    %221 = vmatpush2.msra.mxu0 0.0
    %222 = vmatprep.subr.mxu0 0.0
    %223 = vmatpush2.msra.mxu0 0.0
    %224 = vmatprep.subr.mxu0 0.0
    %225 = vmatpush2.msra.mxu0 0.0
    %226 = vmatprep.subr.mxu0 0.0
    %227 = vmatpush2.msra.mxu0 0.0
    %228 = vmatprep.subr.mxu0 0.0
    %229 = vmatpush2.msra.mxu0 0.0
    %230 = vmatprep.subr.mxu0 0.0
    %231 = vmatpush2.msra.mxu0 0.0
    %232 = vmatprep.subr.mxu0 0.0
    %233 = vmatpush2.msra.mxu0 0.0
    %234 = vmatprep.subr.mxu0 0.0
    %235 = vmatpush2.msra.mxu0 0.0
    %236 = vmatprep.subr.mxu0 0.0
    %237 = vmatpush2.msra.mxu0 0.0
    %238 = vmatprep.mubr.f32.mxu0 0.0
    %239 = vmatmul.mubr.f32.gmra.mxu0 %v172
    %v240 = vpop.f32.mrf.mxu0
    %v241 = vadd.f32 0.0, %v240
    %v242 = vpop.f32.mrf.mxu0
    %243 = vdwg.mxu0
    %244 = vset.pattern.permute.xlu0 2
    %245 = vperm.xlu0 %244, %v56
    %v246 = vpop.permute.xlu0 %245
    %vm247 = vcmp.eq.s32.totalorder %v55, %v246
    %248 = vset.pattern.permute.xlu0 2
    %249 = vperm.xlu0 %248, %v57
    %v250 = vpop.permute.xlu0 %249
    %v252 = vsel %vm247, %v250, 0.0
    %253 = vset.pattern.permute.xlu0 6
    %254 = vperm.xlu0 %253, %v56
    %v255 = vpop.permute.xlu0 %254
    %vm256 = vcmp.eq.s32.totalorder %v55, %v255
    %257 = vset.pattern.permute.xlu0 6
    %258 = vperm.xlu0 %257, %v57
    %v259 = vpop.permute.xlu0 %258
    %v261 = vsel %vm256, %v259, 0.0
    %v262 = vadd.f32 %v252, %v261
    %v264 = vsel %vm78, %v262, 0
    %266 = vmatprep.subr.mxu0 0.0
    %267 = vmatpush1.msra.mxu0 0.0
    %268 = vmatprep.subr.mxu0 0.0
    %269 = vmatpush1.msra.mxu0 0.0
    %270 = vmatprep.subr.mxu0 0.0
    %271 = vmatpush1.msra.mxu0 0.0
    %272 = vmatprep.subr.mxu0 0.0
    %273 = vmatpush1.msra.mxu0 0.0
    %274 = vmatprep.subr.mxu0 0.0
    %275 = vmatpush1.msra.mxu0 0.0
    %276 = vmatprep.subr.mxu0 0.0
    %277 = vmatpush1.msra.mxu0 0.0
    %278 = vmatprep.subr.mxu0 0.0
    %279 = vmatpush1.msra.mxu0 0.0
    %280 = vmatprep.subr.mxu0 0.0
    %281 = vmatpush1.msra.mxu0 0.0
    %282 = vmatprep.subr.mxu0 0.0
    %283 = vmatpush1.msra.mxu0 0.0
    %284 = vmatprep.subr.mxu0 0.0
    %285 = vmatpush1.msra.mxu0 0.0
    %286 = vmatprep.subr.mxu0 0.0
    %287 = vmatpush1.msra.mxu0 0.0
    %288 = vmatprep.subr.mxu0 0.0
    %289 = vmatpush1.msra.mxu0 0.0
    %290 = vmatprep.subr.mxu0 0.0
    %291 = vmatpush1.msra.mxu0 0.0
    %292 = vmatprep.subr.mxu0 0.0
    %293 = vmatpush1.msra.mxu0 0.0
    %294 = vmatprep.subr.mxu0 0.0
    %295 = vmatpush1.msra.mxu0 %v53
    %296 = vmatprep.subr.mxu0 0.0
    %297 = vmatpush1.msra.mxu0 %v52
    %298 = vmatprep.subr.mxu0 0.0
    %299 = vmatpush2.msra.mxu0 0.0
    %300 = vmatprep.subr.mxu0 0.0
    %301 = vmatpush2.msra.mxu0 0.0
    %302 = vmatprep.subr.mxu0 0.0
    %303 = vmatpush2.msra.mxu0 0.0
    %304 = vmatprep.subr.mxu0 0.0
    %305 = vmatpush2.msra.mxu0 0.0
    %306 = vmatprep.subr.mxu0 0.0
    %307 = vmatpush2.msra.mxu0 0.0
    %308 = vmatprep.subr.mxu0 0.0
    %309 = vmatpush2.msra.mxu0 0.0
    %310 = vmatprep.subr.mxu0 0.0
    %311 = vmatpush2.msra.mxu0 0.0
    %312 = vmatprep.subr.mxu0 0.0
    %313 = vmatpush2.msra.mxu0 0.0
    %314 = vmatprep.subr.mxu0 0.0
    %315 = vmatpush2.msra.mxu0 0.0
    %316 = vmatprep.subr.mxu0 0.0
    %317 = vmatpush2.msra.mxu0 0.0
    %318 = vmatprep.subr.mxu0 0.0
    %319 = vmatpush2.msra.mxu0 0.0
    %320 = vmatprep.subr.mxu0 0.0
    %321 = vmatpush2.msra.mxu0 0.0
    %322 = vmatprep.subr.mxu0 0.0
    %323 = vmatpush2.msra.mxu0 0.0
    %324 = vmatprep.subr.mxu0 0.0
    %325 = vmatpush2.msra.mxu0 0.0
    %326 = vmatprep.subr.mxu0 0.0
    %327 = vmatpush2.msra.mxu0 0.0
    %328 = vmatprep.subr.mxu0 0.0
    %329 = vmatpush2.msra.mxu0 0.0
    %330 = vmatprep.mubr.f32.mxu0 0.0
    %331 = vmatmul.mubr.f32.gmra.mxu0 %v264
    %v332 = vpop.f32.mrf.mxu0
    %v333 = vadd.f32 0.0, %v332
    %v334 = vpop.f32.mrf.mxu0
    %335 = vdwg.mxu0
    %336 = vset.pattern.permute.xlu0 3
    %337 = vperm.xlu0 %336, %v56
    %v338 = vpop.permute.xlu0 %337
    %vm339 = vcmp.eq.s32.totalorder %v55, %v338
    %340 = vset.pattern.permute.xlu0 3
    %341 = vperm.xlu0 %340, %v57
    %v342 = vpop.permute.xlu0 %341
    %v344 = vsel %vm339, %v342, 0.0
    %345 = vset.pattern.permute.xlu0 7
    %346 = vperm.xlu0 %345, %v56
    %v347 = vpop.permute.xlu0 %346
    %vm348 = vcmp.eq.s32.totalorder %v55, %v347
    %349 = vset.pattern.permute.xlu0 7
    %350 = vperm.xlu0 %349, %v57
    %v351 = vpop.permute.xlu0 %350
    %v353 = vsel %vm348, %v351, 0.0
    %v354 = vadd.f32 %v344, %v353
    %v356 = vsel %vm78, %v354, 0
    %358 = vmatprep.subr.mxu0 0.0
    %359 = vmatpush1.msra.mxu0 0.0
    %360 = vmatprep.subr.mxu0 0.0
    %361 = vmatpush1.msra.mxu0 0.0
    %362 = vmatprep.subr.mxu0 0.0
    %363 = vmatpush1.msra.mxu0 0.0
    %364 = vmatprep.subr.mxu0 0.0
    %365 = vmatpush1.msra.mxu0 0.0
    %366 = vmatprep.subr.mxu0 0.0
    %367 = vmatpush1.msra.mxu0 0.0
    %368 = vmatprep.subr.mxu0 0.0
    %369 = vmatpush1.msra.mxu0 0.0
    %370 = vmatprep.subr.mxu0 0.0
    %371 = vmatpush1.msra.mxu0 0.0
    %372 = vmatprep.subr.mxu0 0.0
    %373 = vmatpush1.msra.mxu0 0.0
    %374 = vmatprep.subr.mxu0 0.0
    %375 = vmatpush1.msra.mxu0 0.0
    %376 = vmatprep.subr.mxu0 0.0
    %377 = vmatpush1.msra.mxu0 0.0
    %378 = vmatprep.subr.mxu0 0.0
    %379 = vmatpush1.msra.mxu0 0.0
    %380 = vmatprep.subr.mxu0 0.0
    %381 = vmatpush1.msra.mxu0 0.0
    %382 = vmatprep.subr.mxu0 0.0
    %383 = vmatpush1.msra.mxu0 0.0
    %384 = vmatprep.subr.mxu0 0.0
    %385 = vmatpush1.msra.mxu0 0.0
    %386 = vmatprep.subr.mxu0 0.0
    %387 = vmatpush1.msra.mxu0 %v53
    %388 = vmatprep.subr.mxu0 0.0
    %389 = vmatpush1.msra.mxu0 %v52
    %390 = vmatprep.subr.mxu0 0.0
    %391 = vmatpush2.msra.mxu0 0.0
    %392 = vmatprep.subr.mxu0 0.0
    %393 = vmatpush2.msra.mxu0 0.0
    %394 = vmatprep.subr.mxu0 0.0
    %395 = vmatpush2.msra.mxu0 0.0
    %396 = vmatprep.subr.mxu0 0.0
    %397 = vmatpush2.msra.mxu0 0.0
    %398 = vmatprep.subr.mxu0 0.0
    %399 = vmatpush2.msra.mxu0 0.0
    %400 = vmatprep.subr.mxu0 0.0
    %401 = vmatpush2.msra.mxu0 0.0
    %402 = vmatprep.subr.mxu0 0.0
    %403 = vmatpush2.msra.mxu0 0.0
    %404 = vmatprep.subr.mxu0 0.0
    %405 = vmatpush2.msra.mxu0 0.0
    %406 = vmatprep.subr.mxu0 0.0
    %407 = vmatpush2.msra.mxu0 0.0
    %408 = vmatprep.subr.mxu0 0.0
    %409 = vmatpush2.msra.mxu0 0.0
    %410 = vmatprep.subr.mxu0 0.0
    %411 = vmatpush2.msra.mxu0 0.0
    %412 = vmatprep.subr.mxu0 0.0
    %413 = vmatpush2.msra.mxu0 0.0
    %414 = vmatprep.subr.mxu0 0.0
    %415 = vmatpush2.msra.mxu0 0.0
    %416 = vmatprep.subr.mxu0 0.0
    %417 = vmatpush2.msra.mxu0 0.0
    %418 = vmatprep.subr.mxu0 0.0
    %419 = vmatpush2.msra.mxu0 0.0
    %420 = vmatprep.subr.mxu0 0.0
    %421 = vmatpush2.msra.mxu0 0.0
    %422 = vmatprep.mubr.f32.mxu0 0.0
    %423 = vmatmul.mubr.f32.gmra.mxu0 %v356
    %v424 = vpop.f32.mrf.mxu0
    %v425 = vadd.f32 0.0, %v424
    %v426 = vpop.f32.mrf.mxu0
    %427 = vdwg.mxu0
    %429 = vrot.lane.b32.xlu0 %v241, 32
    %v430 = vpop.permute.xlu0 %429
    %433 = vrot.lane.b32.xlu0 %v333, 64
    %v434 = vpop.permute.xlu0 %433
    %437 = vrot.lane.b32.xlu0 %v425, 96
    %v438 = vpop.permute.xlu0 %437
    %vm440 = vcmask 261120
    %v441 = vsel %vm440, %v149, %v430
    %vm442 = vcmask 523264
    %v443 = vsel %vm442, %v441, %v434
    %vm444 = vcmask 785408
    %v445 = vsel %vm444, %v443, %v438
    %446 = vst [vmem:[#allocation8] sm:$0xff] %v445
    // Predicated region
    $region26: #{tpu_custom_call.1} parent=1 // pred_check
      _
    $region27: #{tpu_custom_call.1} parent=1 // pred_check_branch
      %448 = sbr.rel (0) target = $region29
    $region28: #{tpu_custom_call.1} parent=1 // pred_region
      %s450 = ssub.s32 128, 128
      %451 = vsyncadd [#allocation4], %s450
      %s453 = sshll.u32 [#allocation8], 4
      %s454 = int_to_ptr.vmem [resolvable:$true] %s453
      %456 = dma.vmem_to_hbm [thread:$0]  %s454, 128, %s3, [#allocation4]
    $region29: #{tpu_custom_call.1} parent=1 // pred_fallthru
      _
    // Predicated region
    $region30: #{tpu_custom_call.1} parent=1 // pred_check
      _
    $region31: #{tpu_custom_call.1} parent=1 // pred_check_branch
      %458 = sbr.rel (0) target = $region33
    $region32: #{tpu_custom_call.1} parent=1 // pred_region
      %459 = dma.done [#allocation4], 128
    $region33: #{tpu_custom_call.1} parent=1 // pred_fallthru
      _
    %460 = vsyncpa [#allocation3], 1
    %461 = vsyncpa [#allocation6], 1
    %462 = vsyncpa [#allocation4], 1

</llo_original>
